<compile_context>
chip_gen: v6e
topology: v6e:2x2x1
jax: 0.10.0
libtpu: 0.0.40
codegen_flags: <defaults>
</compile_context>

<pallas_src>
import functools

import jax
import jax.numpy as jnp
from jax.experimental import pallas as pl
from jax.experimental.pallas import tpu as pltpu

_FALLBACK_VMEM_BYTES = 64 << 20        # conservative: fits every TPU generation
_MEGACORE_MIN_SPLIT_BYTES = 4 << 20    # B=1 image size above which v7x prefers two-pass
_MIN_BLOCK_BYTES = 1 << 20             # keep per-step slabs >= ~1 MiB when possible


# ----------------------------- kernels ------------------------------------ #

def _se_fused_kernel(x_ref, w1_ref, w2_ref, o_ref):
    # x_ref / o_ref: (bt, C, HW);  w1_ref: (mid, C);  w2_ref: (C, mid)  (f32).
    xv = x_ref[...]                                   # bind once: single vld stream
    inv_hw = jnp.float32(1.0 / xv.shape[-1])
    # Global average pool: f32 sum over the lane (spatial) axis, scaled by 1/HW.
    pooled = jnp.sum(xv.astype(jnp.float32), axis=-1) * inv_hw              # (bt, C)
    # Squeeze-excite MLP on VPU/XLU (broadcast-mul + lane reduce); the
    # (mid,C)x(C,1) / (C,mid)x(mid,1) matmuls are too degenerate for the MXU.
    h = jnp.maximum(
        jnp.sum(pooled[:, None, :] * w1_ref[...][None, :, :], axis=-1), 0.0)  # (bt, mid)
    s = jax.nn.sigmoid(
        jnp.sum(h[:, None, :] * w2_ref[...][None, :, :], axis=-1))            # (bt, C)
    # Channel-wise rescale in the input dtype (lane-dense store over HW).
    o_ref[...] = xv * s[..., None].astype(o_ref.dtype)


def _se_pool_kernel(x_ref, sum_ref, *, hw_total, hw_tile, tiles_per_part,
                    split_hw, need_mask):
    # x_ref: (C, hwt);  sum_ref: (C, 1) f32, resident across the hw grid axis.
    h = pl.program_id(1)

    @pl.when(h == 0)
    def _():
        sum_ref[...] = jnp.zeros_like(sum_ref)

    xv = x_ref[...].astype(jnp.float32)
    if need_mask:
        # Zero out lanes past the true spatial extent (ragged last tile) and
        # zero out fully-duplicated tiles produced by index_map clamping in the
        # B==1 HW-split mode. OOB block contents are undefined -> must mask.
        tile = (pl.program_id(0) * tiles_per_part + h) if split_hw else h
        lane = jax.lax.broadcasted_iota(jnp.int32, xv.shape, xv.ndim - 1)
        xv = jnp.where(tile * hw_tile + lane < hw_total, xv, 0.0)
    sum_ref[...] += jnp.sum(xv, axis=-1, keepdims=True)


def _se_scale_kernel(x_ref, s_ref, o_ref):
    # x_ref / o_ref: (C, hwt);  s_ref: (C, 1) already cast to the input dtype.
    # Ragged tail block: garbage lanes are multiplied but clipped on writeback.
    o_ref[...] = x_ref[...] * s_ref[...]


# ----------------------------- sizing helpers ------------------------------ #

def _device_budgets():
    """Per-TPU-generation (block_bytes, vmem_limit_bytes, megacore)."""
    try:
        cap = int(pltpu.get_tpu_info().vmem_capacity_bytes)
        detected = cap > 0
    except Exception:
        cap, detected = 0, False
    if not detected:
        cap = _FALLBACK_VMEM_BYTES
    vmem_limit = (cap * 3) // 4                 # ~0.75 * physical VMEM
    block_bytes = max((cap * 5) // 32, _MIN_BLOCK_BYTES)   # ~10 MiB v7x / ~20 MiB v5e,v6e
    # v7x-style chip: 64 MiB VMEM per TensorCore and 2 TensorCores per chip.
    megacore = detected and cap <= (64 << 20)
    return block_bytes, vmem_limit, megacore


def _pick_batch_block(B, bytes_per_batch, block_bytes):
    """Batch block for the fused path: big slabs, but >=2 (ideally >=4) steps."""
    if B == 1:
        return 1
    divisors = [d for d in range(1, B) if B % d == 0]     # never a single step when B > 1
    fitting = [d for d in divisors if d * bytes_per_batch <= block_bytes] or [1]
    # >= 4 grid steps hides the pipeline prologue/epilogue and balances v7x's
    # two TensorCores, as long as blocks stay >= ~1 MiB.
    good = [d for d in fitting
            if B // d >= 4 and d * bytes_per_batch >= _MIN_BLOCK_BYTES] or fitting
    even = [d for d in good if (B // d) % 2 == 0]          # even step count: TC balance
    return max(even or good)


def _pick_hw_tile(C, itemsize, HW, block_bytes, hw_tile):
    """Lane tile for the two-pass path; independent of B (per-step ~block_bytes)."""
    if hw_tile is None:
        lanes = block_bytes // max(1, C * itemsize)
        hw_tile = max(512, (lanes // 128) * 128)   # >=512 lanes -> ~85%+ of HBM roofline
    hw_tile = max(128, (hw_tile // 128) * 128)     # multiple of 128 -> unmasked vst
    hw_tile = min(hw_tile, pl.cdiv(HW, 128) * 128)
    return hw_tile


# ----------------------------- wrapper ------------------------------------ #

def se_block(x, w1, w2, *, force_two_pass=False, hw_tile=None, donate_x=False):
    """SEBlock forward. x: (B, C, H, W); w1: (C//r, C); w2: (C, C//r)."""
    B, C, H, W = x.shape
    HW = H * W
    mid = w1.shape[0]
    assert w1.shape == (mid, C) and w2.shape == (C, mid)

    block_bytes, vmem_limit, megacore = _device_budgets()

    x_flat = x.reshape(B, C, HW)                 # free: merges contiguous minor dims
    w1f = jnp.asarray(w1, jnp.float32)           # compute dtype fixed at trace time
    w2f = jnp.asarray(w2, jnp.float32)
    itemsize = jnp.dtype(x.dtype).itemsize
    bytes_per_batch = C * HW * itemsize

    cparams = functools.partial(pltpu.CompilerParams, vmem_limit_bytes=vmem_limit)
    # Only alias x into the output when the caller explicitly donates it.
    aliases = {0: 0} if donate_x else {}

    use_fused = (not force_two_pass) and bytes_per_batch <= block_bytes
    # v7x (2 TCs): a B=1 fused call runs its 2x traffic on a single core; the
    # two-pass path (3x traffic) megacore-shards both passes across the cores,
    # which wins once the image is big enough for both cores to get real work.
    if use_fused and megacore and B == 1 and bytes_per_batch >= _MEGACORE_MIN_SPLIT_BYTES:
        use_fused = False

    if use_fused:
        # ---- fused single-pass path: whole (bt, C, HW) slab per grid step ----
        bt = _pick_batch_block(B, bytes_per_batch, block_bytes)
        out_flat = pl.pallas_call(
            _se_fused_kernel,
            out_shape=jax.ShapeDtypeStruct((B, C, HW), x.dtype),
            grid=(B // bt,),
            in_specs=[
                pl.BlockSpec((bt, C, HW), lambda b: (b, 0, 0)),
                pl.BlockSpec((mid, C), lambda b: (0, 0)),   # constant index: never re-DMA'd
                pl.BlockSpec((C, mid), lambda b: (0, 0)),
            ],
            out_specs=pl.BlockSpec((bt, C, HW), lambda b: (b, 0, 0)),
            compiler_params=cparams(dimension_semantics=("parallel",)),
            input_output_aliases=aliases,
        )(x_flat, w1f, w2f)
        return out_flat.reshape(B, C, H, W)

    # ---- two-pass HW-tiled path: pool -> tiny MLP -> scale (no pad / slice) ----
    hwt = _pick_hw_tile(C, itemsize, HW, block_bytes, hw_tile)
    n_hw = pl.cdiv(HW, hwt)
    # For B==1 make sure the image splits into >=2 hw groups so the pool pass
    # exposes a 2-wide parallel axis for v7x's two TensorCores.
    if B == 1 and n_hw < 2 and HW >= 256:
        hwt = pl.cdiv(pl.cdiv(HW, 2), 128) * 128
        n_hw = pl.cdiv(HW, hwt)
    ragged = (HW % hwt) != 0

    if B == 1:
        # Leading "parallel" axis = 2 HW halves; index_map clamps past the end
        # and the in-kernel mask zeroes the clamped duplicate + ragged lanes.
        n_par = 2 if n_hw >= 2 else 1
        n_half = pl.cdiv(n_hw, n_par)
        split_hw = True
        need_mask = ragged or (n_par * n_half != n_hw)
        pool_grid = (n_par, n_half)
        pool_in_map = lambda p, h: (0, 0, jnp.minimum(p * n_half + h, n_hw - 1))
        out_parts = n_par
    else:
        # Leading "parallel" axis = batches (one partial-sum block per batch).
        n_half = n_hw
        split_hw = False
        need_mask = ragged
        pool_grid = (B, n_hw)
        pool_in_map = lambda b, h: (b, 0, h)
        out_parts = B

    pool_out = pl.pallas_call(
        functools.partial(_se_pool_kernel, hw_total=HW, hw_tile=hwt,
                          tiles_per_part=n_half, split_hw=split_hw,
                          need_mask=need_mask),
        out_shape=jax.ShapeDtypeStruct((out_parts, C, 1), jnp.float32),
        grid=pool_grid,
        in_specs=[pl.BlockSpec((None, C, hwt), pool_in_map)],
        out_specs=pl.BlockSpec((None, C, 1), lambda p, h: (p, 0, 0)),
        compiler_params=cparams(dimension_semantics=("parallel", "arbitrary")),
    )(x_flat)

    if split_hw:
        sums = jnp.sum(pool_out, axis=0).reshape(1, C)        # combine HW halves
    else:
        sums = pool_out.reshape(B, C)

    # Tiny squeeze-excite MLP over all batches at once -- not worth a kernel.
    mean = sums * jnp.float32(1.0 / HW)                       # true HW (masked sums)
    s = jax.nn.sigmoid(jax.nn.relu(mean @ w1f.T) @ w2f.T)     # (B, C)
    s = s.astype(x.dtype).reshape(B, C, 1)

    out_flat = pl.pallas_call(
        _se_scale_kernel,
        out_shape=jax.ShapeDtypeStruct((B, C, HW), x.dtype),
        grid=(B, n_hw),
        in_specs=[
            pl.BlockSpec((None, C, hwt), lambda b, h: (b, 0, h)),
            pl.BlockSpec((None, C, 1), lambda b, h: (b, 0, 0)),
        ],
        out_specs=pl.BlockSpec((None, C, hwt), lambda b, h: (b, 0, h)),
        compiler_params=cparams(dimension_semantics=("parallel", "parallel")),
        input_output_aliases=aliases,
    )(x_flat, s)
    return out_flat.reshape(B, C, H, W)


def se_block_reference(x, w1, w2):
    """Plain-JAX reference matching the PyTorch forward."""
    pooled = jnp.mean(x, axis=(2, 3), keepdims=True)              # (B, C, 1, 1)
    h = jax.nn.relu(jnp.einsum('mc,bcij->bmij', w1, pooled))      # conv1 + relu
    s = jax.nn.sigmoid(jnp.einsum('cm,bmij->bcij', w2, h))        # conv2 + sigmoid
    return x * s


if __name__ == "__main__":
    # Module config: in_nc=16, reduction=8 -> mid channels = 2, bias=False.
    in_nc, reduction = 16, 8
    mid = in_nc // reduction

    key = jax.random.PRNGKey(0)
    kx, k1, k2, kx2, kx3, kx4 = jax.random.split(key, 6)
    w1 = jax.random.normal(k1, (mid, in_nc), dtype=jnp.float32) * 0.1   # conv1 (O,I,1,1)->(O,I)
    w2 = jax.random.normal(k2, (in_nc, mid), dtype=jnp.float32) * 0.1   # conv2 (O,I,1,1)->(O,I)

    # 1) fused single-pass path (small spatial extent, batch-parallel grid).
    x = jax.random.normal(kx, (2, in_nc, 16, 16), dtype=jnp.float32)
    out = jax.block_until_ready(se_block(x, w1, w2))
    ref = se_block_reference(x, w1, w2)
    assert out.shape == x.shape
    assert jnp.allclose(out, ref, atol=1e-5, rtol=1e-5), "fused path mismatch"

    # 2) two-pass path, B=1: HW-split parallel pool partitions, divisible HW.
    x2 = jax.random.normal(kx2, (1, in_nc, 64, 64), dtype=jnp.float32)
    out2 = jax.block_until_ready(
        se_block(x2, w1, w2, force_two_pass=True, hw_tile=1024))
    ref2 = se_block_reference(x2, w1, w2)
    assert jnp.allclose(out2, ref2, atol=1e-5, rtol=1e-5), "two-pass B=1 mismatch"

    # 3) two-pass path, B=1, ragged HW: in-kernel lane masking, clipped writeback.
    x3 = jax.random.normal(kx3, (1, in_nc, 20, 20), dtype=jnp.float32)
    out3 = jax.block_until_ready(
        se_block(x3, w1, w2, force_two_pass=True, hw_tile=128))
    ref3 = se_block_reference(x3, w1, w2)
    assert jnp.allclose(out3, ref3, atol=1e-5, rtol=1e-5), "ragged two-pass mismatch"

    # 4) two-pass path, B>1: batch-parallel pool partitions, ragged HW.
    x4 = jax.random.normal(kx4, (2, in_nc, 24, 24), dtype=jnp.float32)
    out4 = jax.block_until_ready(
        se_block(x4, w1, w2, force_two_pass=True, hw_tile=128))
    ref4 = se_block_reference(x4, w1, w2)
    assert jnp.allclose(out4, ref4, atol=1e-5, rtol=1e-5), "batched two-pass mismatch"

    print("KERNEL_OK")
</pallas_src>

<mosaic_0001>
module attributes {stable_mosaic.version = 11 : i64} {
  func.func @_se_fused_kernel(%arg0: i32, %arg1: memref<1x16x256xf32, #tpu.memory_space<vmem>>, %arg2: memref<2x16xf32, #tpu.memory_space<vmem>>, %arg3: memref<16x2xf32, #tpu.memory_space<vmem>>, %arg4: memref<1x16x256xf32, #tpu.memory_space<vmem>>) attributes {dimension_semantics = [#tpu.dimension_semantics<parallel>], iteration_bounds = array<i64: 2>, scalar_prefetch = 0 : i64, scratch_operands = 0 : i64, tpu.core_type = #tpu.core_type<tc>, window_params = [{transform_indices = @transform_0, window_bounds = array<i64: 1, 16, 256>}, {pipeline_mode = #tpu.pipeline_mode<synchronous>, transform_indices = @transform_1, window_bounds = array<i64: 2, 16>}, {pipeline_mode = #tpu.pipeline_mode<synchronous>, transform_indices = @transform_2, window_bounds = array<i64: 16, 2>}, {transform_indices = @transform_3, window_bounds = array<i64: 1, 16, 256>}]} {
    %c0 = arith.constant 0 : index
    %c0_0 = arith.constant 0 : index
    %c0_1 = arith.constant 0 : index
    %0 = vector.load %arg1[%c0, %c0_0, %c0_1] : memref<1x16x256xf32, #tpu.memory_space<vmem>>, vector<1x16x256xf32>
    %cst = arith.constant dense<0.000000e+00> : vector<1x16xf32>
    %1 = vector.multi_reduction <add>, %0, %cst [2] : vector<1x16x256xf32> to vector<1x16xf32>
    %cst_2 = arith.constant 3.906250e-03 : f32
    %2 = vector.broadcast %cst_2 : f32 to vector<1x16xf32>
    %3 = arith.mulf %1, %2 : vector<1x16xf32>
    %4 = vector.shape_cast %3 : vector<1x16xf32> to vector<1x1x16xf32>
    %c0_3 = arith.constant 0 : index
    %c0_4 = arith.constant 0 : index
    %5 = vector.load %arg2[%c0_3, %c0_4] : memref<2x16xf32, #tpu.memory_space<vmem>>, vector<2x16xf32>
    %6 = vector.shape_cast %5 : vector<2x16xf32> to vector<1x2x16xf32>
    %7 = vector.broadcast %4 : vector<1x1x16xf32> to vector<1x2x16xf32>
    %8 = arith.mulf %7, %6 : vector<1x2x16xf32>
    %cst_5 = arith.constant dense<0.000000e+00> : vector<1x2xf32>
    %9 = vector.multi_reduction <add>, %8, %cst_5 [2] : vector<1x2x16xf32> to vector<1x2xf32>
    %cst_6 = arith.constant 0.000000e+00 : f32
    %10 = vector.broadcast %cst_6 : f32 to vector<1x2xf32>
    %11 = arith.maximumf %9, %10 : vector<1x2xf32>
    %12 = vector.shape_cast %11 : vector<1x2xf32> to vector<1x1x2xf32>
    %c0_7 = arith.constant 0 : index
    %c0_8 = arith.constant 0 : index
    %13 = vector.load %arg3[%c0_7, %c0_8] : memref<16x2xf32, #tpu.memory_space<vmem>>, vector<16x2xf32>
    %14 = vector.shape_cast %13 : vector<16x2xf32> to vector<1x16x2xf32>
    %15 = vector.broadcast %12 : vector<1x1x2xf32> to vector<1x16x2xf32>
    %16 = arith.mulf %15, %14 : vector<1x16x2xf32>
    %cst_9 = arith.constant dense<0.000000e+00> : vector<1x16xf32>
    %17 = vector.multi_reduction <add>, %16, %cst_9 [2] : vector<1x16x2xf32> to vector<1x16xf32>
    %18 = arith.negf %17 : vector<1x16xf32>
    %19 = math.exp %18 : vector<1x16xf32>
    %cst_10 = arith.constant 1.000000e+00 : f32
    %20 = vector.broadcast %cst_10 : f32 to vector<1x16xf32>
    %21 = arith.addf %20, %19 : vector<1x16xf32>
    %22 = arith.divf %20, %21 : vector<1x16xf32>
    %23 = vector.shape_cast %22 : vector<1x16xf32> to vector<1x16x1xf32>
    %24 = vector.broadcast %23 : vector<1x16x1xf32> to vector<1x16x256xf32>
    %25 = arith.mulf %0, %24 : vector<1x16x256xf32>
    %c0_11 = arith.constant 0 : index
    %c0_12 = arith.constant 0 : index
    %c0_13 = arith.constant 0 : index
    %26 = vector.load %arg4[%c0_11, %c0_12, %c0_13] : memref<1x16x256xf32, #tpu.memory_space<vmem>>, vector<1x16x256xf32>
    tpu.vector_store %arg4[%c0_11, %c0_12, %c0_13], %25 {strides = array<i32>} : memref<1x16x256xf32, #tpu.memory_space<vmem>>, vector<1x16x256xf32>,
    return
  }
  func.func @transform_0(%arg0: i32) -> (i32, i32, i32) {
    %c0_i32 = arith.constant 0 : i32
    %c0_i32_0 = arith.constant 0 : i32
    %c0_i32_1 = arith.constant 0 : i32
    return %arg0, %c0_i32, %c0_i32_0 : i32, i32, i32
  }
  func.func @transform_1(%arg0: i32) -> (i32, i32) {
    %c0_i32 = arith.constant 0 : i32
    %c0_i32_0 = arith.constant 0 : i32
    %c0_i32_1 = arith.constant 0 : i32
    return %c0_i32, %c0_i32_0 : i32, i32
  }
  func.func @transform_2(%arg0: i32) -> (i32, i32) {
    %c0_i32 = arith.constant 0 : i32
    %c0_i32_0 = arith.constant 0 : i32
    %c0_i32_1 = arith.constant 0 : i32
    return %c0_i32, %c0_i32_0 : i32, i32
  }
  func.func @transform_3(%arg0: i32) -> (i32, i32, i32) {
    %c0_i32 = arith.constant 0 : i32
    %c0_i32_0 = arith.constant 0 : i32
    %c0_i32_1 = arith.constant 0 : i32
    return %arg0, %c0_i32, %c0_i32_0 : i32, i32, i32
  }
}

</mosaic_0001>

<llo_original>
// kernel: tpu_custom_call.1
$region0: #{tpu_custom_call.1}
  #allocation0 [shape = 'u32[]', space=smem, size = 0x4, offset = 0x4, fixed_abs, tag = 'smem constant byte address 0x4 - core index']
  #allocation1 [shape = 'u32[144,128]{1,0:T(1,128)}', space=vmem, size = 0x12000, scoped, tag = 'internal scratch']
  %s0 = inlined_call_operand.hbm [shape: f32[2,16,256], index: 0, kind: input, shape index: {}]
  %s1 = inlined_call_operand.vmem [shape: f32[2,16], index: 1, kind: input, shape index: {}]
  %s2 = inlined_call_operand.vmem [shape: f32[16,2], index: 2, kind: input, shape index: {}]
  %s3 = inlined_call_operand.hbm [shape: f32[2,16,256], index: 3, kind: output, shape index: {}]
  %s4 = sld [smem:[#allocation0]]
  $region49: #{tpu_custom_call.1} parent=0
    _
  %s6 = ssub.s32 1, %s4
  %s7 = scalar_select 0, %s6, %s4
  $region1: #{tpu_custom_call.1} parent=0
    #allocation2 [shape = 'u8[32768]{0}', space=vmem, size = 0x8000, scoped, tag = 'input window, operand 0']
    #allocation3 [shape = 's32[2]{0}', space=sflag, size = 0x8, scoped, tag = 'scoped memory for tpu_custom_call.1']
    #allocation4 [shape = 's32[2]{0}', space=sflag, size = 0x8, scoped, tag = 'scoped memory for tpu_custom_call.1']
    #allocation5 [shape = 'u8[32768]{0}', space=vmem, size = 0x8000, scoped, tag = 'output window, operand 0']
    %8 = vsyncpa [#allocation3], 0
    %s9 = scalar_lea.sflag [#allocation3], 1
    %10 = vsyncpa %s9, 0
    %11 = vsyncpa [#allocation4], 0
    %s12 = scalar_lea.sflag [#allocation4], 1
    %13 = vsyncpa %s12, 0
    loop: start=0, step=1, limit=4
    $region2: #{tpu_custom_call.1} parent=1 // loop_pre_header
      _
    $region3: #{tpu_custom_call.1} parent=1 // loop_header
      %s15 = sphi 0, %s19
      %p16 = scmp.ge.s32.totalorder %s15, 4
      %s25 = sphi 0, %s27
      %s28 = sphi 0, %s25
      %s29 = sphi 0, %s28
      %s45 = sphi 0, %s29
      %s49 = sphi 0, %s49
      %s51 = sphi 0, %s49
      %s52 = sphi 0, %s51
      %s66 = sphi 0, %s52
      %s70 = sphi 0, %s70
      %s72 = sphi 0, %s70
      %s73 = sphi 0, %s72
      %s87 = sphi 0, %s73
      %s93 = sphi 0, %s95
      %s96 = sphi 0, %s93
      %s97 = sphi 0, %s96
      %s113 = sphi 0, %s97
    $region4: #{tpu_custom_call.1} parent=1 // loop_header_branch
      %18 = sbr.rel (%p16) target = $region8
    $region5: #{tpu_custom_call.1} parent=1 // loop_body
      %s20 = ssub.s32 %s15, 1
      %s21 = ssub.s32 %s15, 2
      %s22 = sadd.s32 %s15, 1
      %s23 = ssub.s32 %s15, %s22
      %p24 = scmp.eq.s32.totalorder %s23, 0
      %s26 = sadd.s32 %s25, 1
      %s27 = scalar_select %p24, %s25, %s26
      %p30 = pneg %p24
      %p31 = scmp.eq.s32.totalorder %s15, 1
      %p32 = por %p30, %p31
      %p33 = scmp.ne.s32.totalorder %s25, %s28
      %p34 = scmp.eq.s32.totalorder %s15, 0
      %p35 = por %p33, %p34
      %p36 = scmp.ne.s32.totalorder %s25, %s28
      %p37 = scmp.eq.s32.totalorder %s20, 1
      %p38 = por %p36, %p37
      %p39 = scmp.ne.s32.totalorder %s28, %s29
      %p40 = scmp.eq.s32.totalorder %s20, 0
      %p41 = por %p39, %p40
      %p42 = scmp.ne.s32.totalorder %s28, %s29
      %p43 = scmp.eq.s32.totalorder %s21, 1
      %p44 = por %p42, %p43
      %p46 = scmp.ne.s32.totalorder %s29, %s45
      %p47 = scmp.eq.s32.totalorder %s21, 0
      %p48 = por %p46, %p47
      %s50 = sadd.s32 %s49, 1
      %p53 = scmp.eq.s32.totalorder %s15, 1
      %p54 = scmp.ne.s32.totalorder %s49, %s51
      %p55 = scmp.eq.s32.totalorder %s15, 0
      %p56 = por %p54, %p55
      %p57 = scmp.ne.s32.totalorder %s49, %s51
      %p58 = scmp.eq.s32.totalorder %s20, 1
      %p59 = por %p57, %p58
      %p60 = scmp.ne.s32.totalorder %s51, %s52
      %p61 = scmp.eq.s32.totalorder %s20, 0
      %p62 = por %p60, %p61
      %p63 = scmp.ne.s32.totalorder %s51, %s52
      %p64 = scmp.eq.s32.totalorder %s21, 1
      %p65 = por %p63, %p64
      %p67 = scmp.ne.s32.totalorder %s52, %s66
      %p68 = scmp.eq.s32.totalorder %s21, 0
      %p69 = por %p67, %p68
      %s71 = sadd.s32 %s70, 1
      %p74 = scmp.eq.s32.totalorder %s15, 1
      %p75 = scmp.ne.s32.totalorder %s70, %s72
      %p76 = scmp.eq.s32.totalorder %s15, 0
      %p77 = por %p75, %p76
      %p78 = scmp.ne.s32.totalorder %s70, %s72
      %p79 = scmp.eq.s32.totalorder %s20, 1
      %p80 = por %p78, %p79
      %p81 = scmp.ne.s32.totalorder %s72, %s73
      %p82 = scmp.eq.s32.totalorder %s20, 0
      %p83 = por %p81, %p82
      %p84 = scmp.ne.s32.totalorder %s72, %s73
      %p85 = scmp.eq.s32.totalorder %s21, 1
      %p86 = por %p84, %p85
      %p88 = scmp.ne.s32.totalorder %s73, %s87
      %p89 = scmp.eq.s32.totalorder %s21, 0
      %p90 = por %p88, %p89
      %s91 = ssub.s32 %s15, %s22
      %p92 = scmp.eq.s32.totalorder %s91, 0
      %s94 = sadd.s32 %s93, 1
      %s95 = scalar_select %p92, %s93, %s94
      %p98 = pneg %p92
      %p99 = scmp.eq.s32.totalorder %s15, 1
      %p100 = por %p98, %p99
      %p101 = scmp.ne.s32.totalorder %s93, %s96
      %p102 = scmp.eq.s32.totalorder %s15, 0
      %p103 = por %p101, %p102
      %p104 = scmp.ne.s32.totalorder %s93, %s96
      %p105 = scmp.eq.s32.totalorder %s20, 1
      %p106 = por %p104, %p105
      %p107 = scmp.ne.s32.totalorder %s96, %s97
      %p108 = scmp.eq.s32.totalorder %s20, 0
      %p109 = por %p107, %p108
      %p110 = scmp.ne.s32.totalorder %s96, %s97
      %p111 = scmp.eq.s32.totalorder %s21, 1
      %p112 = por %p110, %p111
      %p114 = scmp.ne.s32.totalorder %s97, %s113
      %p115 = scmp.eq.s32.totalorder %s21, 0
      %p116 = por %p114, %p115
      %p117 = scmp.le.s32.totalorder 1, %s15
      %p118 = scmp.lt.s32.totalorder %s15, 3
      %p119 = pnand %p117, %p118
      %p120 = pneg %p119
      // Predicated region
      $region9: #{tpu_custom_call.1} parent=5 // pred_check
        _
      $region10: #{tpu_custom_call.1} parent=5 // pred_check_branch
        %122 = sbr.rel (%p119) target = $region12
      $region11: #{tpu_custom_call.1} parent=5 // pred_region
        %s123 = ssub.s32 %s15, 1
        // Predicated region
        $region13: #{tpu_custom_call.1} parent=11 // pred_check
          %p124 = pneg %p62
        $region14: #{tpu_custom_call.1} parent=11 // pred_check_branch
          %126 = sbr.rel (%p124) target = $region16
        $region15: #{tpu_custom_call.1} parent=11 // pred_region
          _
        $region16: #{tpu_custom_call.1} parent=11 // pred_fallthru
          _
        // Predicated region
        $region17: #{tpu_custom_call.1} parent=11 // pred_check
          %p127 = pneg %p83
        $region18: #{tpu_custom_call.1} parent=11 // pred_check_branch
          %129 = sbr.rel (%p127) target = $region20
        $region19: #{tpu_custom_call.1} parent=11 // pred_region
          _
        $region20: #{tpu_custom_call.1} parent=11 // pred_fallthru
          _
      $region12: #{tpu_custom_call.1} parent=5 // pred_fallthru
        _
      %p130 = scmp.lt.s32.totalorder %s15, 2
      // Predicated region
      $region21: #{tpu_custom_call.1} parent=5 // pred_check
        %p131 = pneg %p130
      $region22: #{tpu_custom_call.1} parent=5 // pred_check_branch
        %133 = sbr.rel (%p131) target = $region24
      $region23: #{tpu_custom_call.1} parent=5 // pred_region
        // Predicated region
        $region25: #{tpu_custom_call.1} parent=23 // pred_check
          %p134 = pneg %p35
        $region26: #{tpu_custom_call.1} parent=23 // pred_check_branch
          %136 = sbr.rel (%p134) target = $region28
        $region27: #{tpu_custom_call.1} parent=23 // pred_region
          %s137 = sand.u32 %s25, 1
          %s138 = scalar_lea.sflag [#allocation3], %s137
          %s139 = sand.u32 %s25, 1
          %s140 = smul.addr %s139, 32
          %s141 = scalar_lea.vmem [#allocation2], %s140
          %s143 = ssub.s32 512, 512
          %144 = vsyncadd %s138, %s143
          %s145 = smul.addr %s15, 4
          %s146 = smul.addr %s145, 128
          %s147 = scalar_lea.hbm %s0, %s146
          %s148 = sshll.u32 %s141, 4
          %s149 = int_to_ptr.vmem [resolvable:$true] %s148
          %154 = dma.hbm_to_vmem [thread:$0]  %s147, 512, %s149, %s138, 256, 256, 16
        $region28: #{tpu_custom_call.1} parent=23 // pred_fallthru
          _
      $region24: #{tpu_custom_call.1} parent=5 // pred_fallthru
        _
      %p155 = scmp.le.s32.totalorder 1, %s15
      %p156 = scmp.lt.s32.totalorder %s15, 3
      %p157 = pnand %p155, %p156
      %p158 = pneg %p157
      // Predicated region
      $region29: #{tpu_custom_call.1} parent=5 // pred_check
        _
      $region30: #{tpu_custom_call.1} parent=5 // pred_check_branch
        %160 = sbr.rel (%p157) target = $region32
      $region31: #{tpu_custom_call.1} parent=5 // pred_region
        %s161 = ssub.s32 %s15, 1
        %s162 = sand.u32 %s28, 1
        %s163 = scalar_lea.sflag [#allocation3], %s162
        %s164 = sand.u32 %s28, 1
        %s165 = smul.addr %s164, 32
        %s166 = scalar_lea.vmem [#allocation2], %s165
        // Predicated region
        $region33: #{tpu_custom_call.1} parent=31 // pred_check
          %p167 = pneg %p41
        $region34: #{tpu_custom_call.1} parent=31 // pred_check_branch
          %169 = sbr.rel (%p167) target = $region36
        $region35: #{tpu_custom_call.1} parent=31 // pred_region
          %170 = dma.done %s163, 512
        $region36: #{tpu_custom_call.1} parent=31 // pred_fallthru
          _
        %s171 = sand.u32 %s28, 1
        %s172 = scalar_lea.sflag [#allocation3], %s171
        %s173 = sand.u32 %s28, 1
        %s174 = smul.addr %s173, 32
        %s175 = scalar_lea.vmem [#allocation2], %s174
        %p176 = pneg %p41
        %p177 = pneg %p38
        %p178 = pneg %p62
        %p179 = pneg %p59
        %p180 = pneg %p83
        %p181 = pneg %p80
        %p182 = pneg %p109
        %p183 = pneg %p106
        %s184 = sand.u32 %s96, 1
        %s185 = scalar_lea.sflag [#allocation4], %s184
        %s186 = sand.u32 %s96, 1
        %s187 = smul.addr %s186, 32
        %s188 = scalar_lea.vmem [#allocation5], %s187
        %v189 = vld [vmem:[%s166] sm:$0xff]
        %v190 = vld [vmem:[%s166 + $0x8] sm:$0xff]
        %v191 = vld [vmem:[%s166 + $0x10] sm:$0xff]
        %v192 = vld [vmem:[%s166 + $0x18] sm:$0xff]
        %v193 = vadd.f32 %v189, %v190
        %194 = vadd.xlane.f32.xlu0 %v193
        %v195 = vpop.xlane.xlu0 %194
        %v196 = vadd.f32 %v191, %v192
        %197 = vadd.xlane.f32.xlu0 %v196
        %v198 = vpop.xlane.xlu0 %197
        %v199 = vmul.f32 %v195, 0.00390625
        %v200 = vmul.f32 %v198, 0.00390625
        %v201 = vld [vmem:[%s1] sm:$0x3]
        %v203 = vlaneseq
        %v204 = vshrl.u32 %v203, 7
        %v205 = vsub.s32 0, %v204
        %v206 = vrot.slane %v201, %v205
        %208 = vbcast.lane.b32.xlu0 %v206, 256
        %v209 = vpop.permute.xlu0 %208
        %s211 = sor.u32 256, 8
        %212 = vbcast.lane.b32.xlu0 %v206, %s211
        %v213 = vpop.permute.xlu0 %212
        %v214 = vlaneseq
        %v215 = vshrl.u32 %v214, 7
        %v216 = vsub.s32 1, %v215
        %v217 = vrot.slane %v201, %v216
        %219 = vbcast.lane.b32.xlu0 %v217, 256
        %v220 = vpop.permute.xlu0 %219
        %s222 = sor.u32 256, 8
        %223 = vbcast.lane.b32.xlu0 %v217, %s222
        %v224 = vpop.permute.xlu0 %223
        %v229 = vmul.f32 %v199, %v209
        %v230 = vmul.f32 %v200, %v213
        %v231 = vmul.f32 %v199, %v220
        %v232 = vmul.f32 %v200, %v224
        %237 = vset.pattern.permute.xlu0 0
        %238 = vperm.xlu0 %237, %v229
        %v239 = vpop.permute.xlu0 %238
        %240 = vset.pattern.permute.xlu0 0
        %241 = vperm.xlu0 %240, %v230
        %v242 = vpop.permute.xlu0 %241
        %243 = vset.pattern.permute.xlu0 0
        %244 = vperm.xlu0 %243, %v231
        %v245 = vpop.permute.xlu0 %244
        %246 = vset.pattern.permute.xlu0 0
        %247 = vperm.xlu0 %246, %v232
        %v248 = vpop.permute.xlu0 %247
        %v249 = vlaneseq
        %v250 = vand.u32 %v249, 127
        %v251 = vlaneseq
        %v252 = vshrl.u32 %v251, 7
        %v253 = vsub.s32 %v250, %v252
        %v254 = vrot.slane %v239, %v253
        %v255 = vadd.s32 %v250, 4294967288
        %v256 = vlaneseq
        %v257 = vshrl.u32 %v256, 7
        %v258 = vsub.s32 %v255, %v257
        %v259 = vrot.slane %v242, %v258
        %vm260 = vcmask 130112
        %v261 = vsel %vm260, %v259, %v254
        %v262 = vlaneseq
        %v263 = vshrl.u32 %v262, 7
        %v264 = vsub.s32 %v250, %v263
        %v265 = vrot.slane %v245, %v264
        %v266 = vlaneseq
        %v267 = vshrl.u32 %v266, 7
        %v268 = vsub.s32 %v255, %v267
        %v269 = vrot.slane %v248, %v268
        %v270 = vsel %vm260, %v269, %v265
        %vm271 = vcmask 1041409
        %v272 = vsel %vm271, %v270, %v261
        %vm274 = vcmask 123904
        %v275 = vsel %vm274, %v272, 0.0
        %276 = vadd.xlane.f32.xlu0 %v275
        %v277 = vpop.xlane.xlu0 %276
        %v278 = vmax.f32 %v277, 0.0
        %v279 = vld [vmem:[%s2] sm:$0xff]
        %v280 = vld [vmem:[%s2 + $0x8] sm:$0xff]
        %v283 = vlaneseq
        %v284 = vshrl.u32 %v283, 7
        %v285 = vsub.s32 0, %v284
        %v286 = vrot.slane %v279, %v285
        %288 = vbcast.lane.b32.xlu0 %v286, 256
        %v289 = vpop.permute.xlu0 %288
        %v290 = vlaneseq
        %v291 = vshrl.u32 %v290, 7
        %v292 = vsub.s32 1, %v291
        %v293 = vrot.slane %v279, %v292
        %295 = vbcast.lane.b32.xlu0 %v293, 256
        %v296 = vpop.permute.xlu0 %295
        %v297 = vlaneseq
        %v298 = vshrl.u32 %v297, 7
        %v299 = vsub.s32 2, %v298
        %v300 = vrot.slane %v279, %v299
        %302 = vbcast.lane.b32.xlu0 %v300, 256
        %v303 = vpop.permute.xlu0 %302
        %v304 = vlaneseq
        %v305 = vshrl.u32 %v304, 7
        %v306 = vsub.s32 3, %v305
        %v307 = vrot.slane %v279, %v306
        %309 = vbcast.lane.b32.xlu0 %v307, 256
        %v310 = vpop.permute.xlu0 %309
        %v311 = vlaneseq
        %v312 = vshrl.u32 %v311, 7
        %v313 = vsub.s32 4, %v312
        %v314 = vrot.slane %v279, %v313
        %316 = vbcast.lane.b32.xlu0 %v314, 256
        %v317 = vpop.permute.xlu0 %316
        %v318 = vlaneseq
        %v319 = vshrl.u32 %v318, 7
        %v320 = vsub.s32 5, %v319
        %v321 = vrot.slane %v279, %v320
        %323 = vbcast.lane.b32.xlu0 %v321, 256
        %v324 = vpop.permute.xlu0 %323
        %v325 = vlaneseq
        %v326 = vshrl.u32 %v325, 7
        %v327 = vsub.s32 6, %v326
        %v328 = vrot.slane %v279, %v327
        %330 = vbcast.lane.b32.xlu0 %v328, 256
        %v331 = vpop.permute.xlu0 %330
        %v332 = vlaneseq
        %v333 = vshrl.u32 %v332, 7
        %v334 = vsub.s32 7, %v333
        %v335 = vrot.slane %v279, %v334
        %337 = vbcast.lane.b32.xlu0 %v335, 256
        %v338 = vpop.permute.xlu0 %337
        %v339 = vlaneseq
        %v340 = vshrl.u32 %v339, 7
        %v341 = vsub.s32 0, %v340
        %v342 = vrot.slane %v280, %v341
        %344 = vbcast.lane.b32.xlu0 %v342, 256
        %v345 = vpop.permute.xlu0 %344
        %v346 = vlaneseq
        %v347 = vshrl.u32 %v346, 7
        %v348 = vsub.s32 1, %v347
        %v349 = vrot.slane %v280, %v348
        %351 = vbcast.lane.b32.xlu0 %v349, 256
        %v352 = vpop.permute.xlu0 %351
        %v353 = vlaneseq
        %v354 = vshrl.u32 %v353, 7
        %v355 = vsub.s32 2, %v354
        %v356 = vrot.slane %v280, %v355
        %358 = vbcast.lane.b32.xlu0 %v356, 256
        %v359 = vpop.permute.xlu0 %358
        %v360 = vlaneseq
        %v361 = vshrl.u32 %v360, 7
        %v362 = vsub.s32 3, %v361
        %v363 = vrot.slane %v280, %v362
        %365 = vbcast.lane.b32.xlu0 %v363, 256
        %v366 = vpop.permute.xlu0 %365
        %v367 = vlaneseq
        %v368 = vshrl.u32 %v367, 7
        %v369 = vsub.s32 4, %v368
        %v370 = vrot.slane %v280, %v369
        %372 = vbcast.lane.b32.xlu0 %v370, 256
        %v373 = vpop.permute.xlu0 %372
        %v374 = vlaneseq
        %v375 = vshrl.u32 %v374, 7
        %v376 = vsub.s32 5, %v375
        %v377 = vrot.slane %v280, %v376
        %379 = vbcast.lane.b32.xlu0 %v377, 256
        %v380 = vpop.permute.xlu0 %379
        %v381 = vlaneseq
        %v382 = vshrl.u32 %v381, 7
        %v383 = vsub.s32 6, %v382
        %v384 = vrot.slane %v280, %v383
        %386 = vbcast.lane.b32.xlu0 %v384, 256
        %v387 = vpop.permute.xlu0 %386
        %v388 = vlaneseq
        %v389 = vshrl.u32 %v388, 7
        %v390 = vsub.s32 7, %v389
        %v391 = vrot.slane %v280, %v390
        %393 = vbcast.lane.b32.xlu0 %v391, 256
        %v394 = vpop.permute.xlu0 %393
        %v411 = vmul.f32 %v278, %v289
        %v412 = vmul.f32 %v278, %v296
        %v413 = vmul.f32 %v278, %v303
        %v414 = vmul.f32 %v278, %v310
        %v415 = vmul.f32 %v278, %v317
        %v416 = vmul.f32 %v278, %v324
        %v417 = vmul.f32 %v278, %v331
        %v418 = vmul.f32 %v278, %v338
        %v419 = vmul.f32 %v278, %v345
        %v420 = vmul.f32 %v278, %v352
        %v421 = vmul.f32 %v278, %v359
        %v422 = vmul.f32 %v278, %v366
        %v423 = vmul.f32 %v278, %v373
        %v424 = vmul.f32 %v278, %v380
        %v425 = vmul.f32 %v278, %v387
        %v426 = vmul.f32 %v278, %v394
        %443 = vset.pattern.permute.xlu0 0
        %444 = vperm.xlu0 %443, %v411
        %v445 = vpop.permute.xlu0 %444
        %446 = vset.pattern.permute.xlu0 0
        %447 = vperm.xlu0 %446, %v412
        %v448 = vpop.permute.xlu0 %447
        %449 = vset.pattern.permute.xlu0 0
        %450 = vperm.xlu0 %449, %v413
        %v451 = vpop.permute.xlu0 %450
        %452 = vset.pattern.permute.xlu0 0
        %453 = vperm.xlu0 %452, %v414
        %v454 = vpop.permute.xlu0 %453
        %455 = vset.pattern.permute.xlu0 0
        %456 = vperm.xlu0 %455, %v415
        %v457 = vpop.permute.xlu0 %456
        %458 = vset.pattern.permute.xlu0 0
        %459 = vperm.xlu0 %458, %v416
        %v460 = vpop.permute.xlu0 %459
        %461 = vset.pattern.permute.xlu0 0
        %462 = vperm.xlu0 %461, %v417
        %v463 = vpop.permute.xlu0 %462
        %464 = vset.pattern.permute.xlu0 0
        %465 = vperm.xlu0 %464, %v418
        %v466 = vpop.permute.xlu0 %465
        %467 = vset.pattern.permute.xlu0 0
        %468 = vperm.xlu0 %467, %v419
        %v469 = vpop.permute.xlu0 %468
        %470 = vset.pattern.permute.xlu0 0
        %471 = vperm.xlu0 %470, %v420
        %v472 = vpop.permute.xlu0 %471
        %473 = vset.pattern.permute.xlu0 0
        %474 = vperm.xlu0 %473, %v421
        %v475 = vpop.permute.xlu0 %474
        %476 = vset.pattern.permute.xlu0 0
        %477 = vperm.xlu0 %476, %v422
        %v478 = vpop.permute.xlu0 %477
        %479 = vset.pattern.permute.xlu0 0
        %480 = vperm.xlu0 %479, %v423
        %v481 = vpop.permute.xlu0 %480
        %482 = vset.pattern.permute.xlu0 0
        %483 = vperm.xlu0 %482, %v424
        %v484 = vpop.permute.xlu0 %483
        %485 = vset.pattern.permute.xlu0 0
        %486 = vperm.xlu0 %485, %v425
        %v487 = vpop.permute.xlu0 %486
        %488 = vset.pattern.permute.xlu0 0
        %489 = vperm.xlu0 %488, %v426
        %v490 = vpop.permute.xlu0 %489
        %v491 = vlaneseq
        %v492 = vshrl.u32 %v491, 7
        %v493 = vsub.s32 %v250, %v492
        %v494 = vrot.slane %v445, %v493
        %v495 = vlaneseq
        %v496 = vshrl.u32 %v495, 7
        %v497 = vsub.s32 %v250, %v496
        %v498 = vrot.slane %v448, %v497
        %v499 = vlaneseq
        %v500 = vshrl.u32 %v499, 7
        %v501 = vsub.s32 %v250, %v500
        %v502 = vrot.slane %v451, %v501
        %v503 = vlaneseq
        %v504 = vshrl.u32 %v503, 7
        %v505 = vsub.s32 %v250, %v504
        %v506 = vrot.slane %v454, %v505
        %v507 = vlaneseq
        %v508 = vshrl.u32 %v507, 7
        %v509 = vsub.s32 %v250, %v508
        %v510 = vrot.slane %v457, %v509
        %v511 = vlaneseq
        %v512 = vshrl.u32 %v511, 7
        %v513 = vsub.s32 %v250, %v512
        %v514 = vrot.slane %v460, %v513
        %v515 = vlaneseq
        %v516 = vshrl.u32 %v515, 7
        %v517 = vsub.s32 %v250, %v516
        %v518 = vrot.slane %v463, %v517
        %v519 = vlaneseq
        %v520 = vshrl.u32 %v519, 7
        %v521 = vsub.s32 %v250, %v520
        %v522 = vrot.slane %v466, %v521
        %v523 = vlaneseq
        %v524 = vshrl.u32 %v523, 7
        %v525 = vsub.s32 %v250, %v524
        %v526 = vrot.slane %v469, %v525
        %v527 = vlaneseq
        %v528 = vshrl.u32 %v527, 7
        %v529 = vsub.s32 %v250, %v528
        %v530 = vrot.slane %v472, %v529
        %v531 = vlaneseq
        %v532 = vshrl.u32 %v531, 7
        %v533 = vsub.s32 %v250, %v532
        %v534 = vrot.slane %v475, %v533
        %v535 = vlaneseq
        %v536 = vshrl.u32 %v535, 7
        %v537 = vsub.s32 %v250, %v536
        %v538 = vrot.slane %v478, %v537
        %v539 = vlaneseq
        %v540 = vshrl.u32 %v539, 7
        %v541 = vsub.s32 %v250, %v540
        %v542 = vrot.slane %v481, %v541
        %v543 = vlaneseq
        %v544 = vshrl.u32 %v543, 7
        %v545 = vsub.s32 %v250, %v544
        %v546 = vrot.slane %v484, %v545
        %v547 = vlaneseq
        %v548 = vshrl.u32 %v547, 7
        %v549 = vsub.s32 %v250, %v548
        %v550 = vrot.slane %v487, %v549
        %v551 = vlaneseq
        %v552 = vshrl.u32 %v551, 7
        %v553 = vsub.s32 %v250, %v552
        %v554 = vrot.slane %v490, %v553
        %v555 = vsel %vm271, %v498, %v494
        %vm556 = vcmask 1042434
        %v557 = vsel %vm556, %v502, %v555
        %vm558 = vcmask 1043459
        %v559 = vsel %vm558, %v506, %v557
        %vm560 = vcmask 1044484
        %v561 = vsel %vm560, %v510, %v559
        %vm562 = vcmask 1045509
        %v563 = vsel %vm562, %v514, %v561
        %vm564 = vcmask 1046534
        %v565 = vsel %vm564, %v518, %v563
        %vm566 = vcmask 1047559
        %v567 = vsel %vm566, %v522, %v565
        %v568 = vsel %vm271, %v530, %v526
        %v569 = vsel %vm556, %v534, %v568
        %v570 = vsel %vm558, %v538, %v569
        %v571 = vsel %vm560, %v542, %v570
        %v572 = vsel %vm562, %v546, %v571
        %v573 = vsel %vm564, %v550, %v572
        %v574 = vsel %vm566, %v554, %v573
        %vm577 = vcmask 15360
        %v578 = vsel %vm577, %v567, 0.0
        %579 = vadd.xlane.f32.xlu0 %v578
        %v580 = vpop.xlane.xlu0 %579
        %v581 = vsel %vm577, %v574, 0.0
        %582 = vadd.xlane.f32.xlu0 %v581
        %v583 = vpop.xlane.xlu0 %582
        %v584 = vxor.u32 %v580, 2147483648
        %v585 = vxor.u32 %v583, 2147483648
        %v586 = vmul.f32 %v584, 1.442695
        %v587 = vpow.pop %v586
        %v588 = vmul.f32 %v585, 1.442695
        %v589 = vpow.pop %v588
        %v590 = vadd.f32 %v587, 1.0
        %v591 = vadd.f32 %v589, 1.0
        %v592 = vrcp.pop %v590
        %v593 = vmul.f32 1.0, %v592
        %v594 = vrcp.pop %v591
        %v595 = vmul.f32 1.0, %v594
        %v596 = vmul.f32 %v189, %v593
        %v597 = vmul.f32 %v190, %v593
        %v598 = vmul.f32 %v191, %v595
        %v599 = vmul.f32 %v192, %v595
        %600 = vst [vmem:[%s188] sm:$0xff] %v596
        %601 = vst [vmem:[%s188 + $0x8] sm:$0xff] %v597
        %602 = vst [vmem:[%s188 + $0x10] sm:$0xff] %v598
        %603 = vst [vmem:[%s188 + $0x18] sm:$0xff] %v599
        %s604 = sand.u32 %s96, 1
        %s605 = scalar_lea.sflag [#allocation4], %s604
        %s606 = sand.u32 %s96, 1
        %s607 = smul.addr %s606, 32
        %s608 = scalar_lea.vmem [#allocation5], %s607
        // Predicated region
        $region37: #{tpu_custom_call.1} parent=31 // pred_check
          %p609 = pneg %p106
        $region38: #{tpu_custom_call.1} parent=31 // pred_check_branch
          %611 = sbr.rel (%p609) target = $region40
        $region39: #{tpu_custom_call.1} parent=31 // pred_region
          %s613 = ssub.s32 512, 512
          %614 = vsyncadd %s605, %s613
          %s615 = smul.addr %s20, 4
          %s616 = smul.addr %s615, 128
          %s617 = scalar_lea.hbm %s3, %s616
          %s618 = sshll.u32 %s608, 4
          %s619 = int_to_ptr.vmem [resolvable:$true] %s618
          %624 = dma.vmem_to_hbm [thread:$0]  %s619, 512, %s617, %s605, 256, 256, 16
        $region40: #{tpu_custom_call.1} parent=31 // pred_fallthru
          _
      $region32: #{tpu_custom_call.1} parent=5 // pred_fallthru
        _
      %p625 = scmp.le.s32.totalorder 2, %s15
      // Predicated region
      $region41: #{tpu_custom_call.1} parent=5 // pred_check
        %p626 = pneg %p625
      $region42: #{tpu_custom_call.1} parent=5 // pred_check_branch
        %628 = sbr.rel (%p626) target = $region44
      $region43: #{tpu_custom_call.1} parent=5 // pred_region
        %s629 = ssub.s32 %s15, 2
        // Predicated region
        $region45: #{tpu_custom_call.1} parent=43 // pred_check
          %p630 = pneg %p112
        $region46: #{tpu_custom_call.1} parent=43 // pred_check_branch
          %632 = sbr.rel (%p630) target = $region48
        $region47: #{tpu_custom_call.1} parent=43 // pred_region
          %s633 = sand.u32 %s97, 1
          %s634 = scalar_lea.sflag [#allocation4], %s633
          %s635 = sand.u32 %s97, 1
          %s636 = smul.addr %s635, 32
          %s637 = scalar_lea.vmem [#allocation5], %s636
          %638 = dma.done %s634, 512
        $region48: #{tpu_custom_call.1} parent=43 // pred_fallthru
          _
      $region44: #{tpu_custom_call.1} parent=5 // pred_fallthru
        _
    $region6: #{tpu_custom_call.1} parent=1 // loop_footer
      %s19 = sadd.s32 1, %s15
    $region7: #{tpu_custom_call.1} parent=1 // loop_footer_branch
      %14 = sbr.rel target = $region3
    $region8: #{tpu_custom_call.1} parent=1 // loop_exit
      _
    %639 = vsyncpa [#allocation3], 1
    %s640 = scalar_lea.sflag [#allocation3], 1
    %641 = vsyncpa %s640, 1
    %642 = vsyncpa [#allocation4], 1
    %s643 = scalar_lea.sflag [#allocation4], 1
    %644 = vsyncpa %s643, 1

</llo_original>
